<compile_context>
chip_gen: v5e
topology: v5e:2x2
jax: 0.10.0
libtpu: 0.0.40
codegen_flags: <defaults>
</compile_context>

<pallas_src>
import jax
import jax.numpy as jnp
from jax.experimental import pallas as pl
from jax.experimental.pallas import tpu as pltpu


def _mlp_kernel(x_ref, w1t_ref, w2t_ref, o_ref):
    # lin1 = x @ W1^T, with W1^T pre-materialized as w1t (num_in, num_hidden):
    # plain (M,K)x(K,N) MXU matmul, f32 accumulation.
    lin1 = jnp.dot(x_ref[...], w1t_ref[...], preferred_element_type=jnp.float32)
    # ReLU on the VPU (f32).
    h = jnp.maximum(lin1, 0.0)
    # lin2 = relu(lin1) @ W2^T, same layout trick. Cast h to the weight dtype
    # so the MXU sees matching (possibly bf16) operands; accumulate in f32.
    lin2 = jnp.dot(
        h.astype(w2t_ref.dtype), w2t_ref[...], preferred_element_type=jnp.float32
    )
    # Exact sigmoid in f32 (single EUP push), then cast to the output dtype.
    o_ref[...] = jax.nn.sigmoid(lin2).astype(o_ref.dtype)


def sigmoid_deeplift_forward(x, w1, w2, *, batch_tile=None, compute_dtype=None):
    """Forward pass of SigmoidDeepLiftModel.

    x:  (B, num_in)
    w1: (num_hidden, num_in)   -- PyTorch nn.Linear layout
    w2: (num_out, num_hidden)  -- PyTorch nn.Linear layout

    batch_tile:    rows per grid step (rounded to a multiple of 8 if < B).
    compute_dtype: optional dtype (e.g. jnp.bfloat16) to cast x / weights to
                   before the kernel; accumulation + sigmoid stay f32 and the
                   output keeps x's original dtype.
    """
    B, num_in = x.shape
    num_hidden, _ = w1.shape
    num_out, _ = w2.shape
    out_dtype = x.dtype

    # One-time wrapper-side transposes of the (tiny) weight matrices so the
    # kernel never re-stages / transposes weights per grid step.
    w1t = jnp.transpose(w1)  # (num_in, num_hidden)
    w2t = jnp.transpose(w2)  # (num_hidden, num_out)

    if compute_dtype is not None:
        x = x.astype(compute_dtype)
        w1t = w1t.astype(compute_dtype)
        w2t = w2t.astype(compute_dtype)

    # ---- batch tile selection --------------------------------------------
    # This kernel is HBM/overhead bound, so big tiles are the main lever.
    # Cap at 4096 rows: lane-padded (4096,128) f32 x/out tiles, double
    # buffered, total ~8 MiB -> safe under v5e's 16 MiB scoped VMEM and far
    # under v6e/v7x budgets. For moderate batches aim for >=2 grid steps so a
    # v7x megacore can shard the "parallel" batch axis across both TCs.
    MAX_TILE = 4096
    if batch_tile is None:
        if B <= 8:
            batch_tile = B
        else:
            batch_tile = min(MAX_TILE, max(8, ((B + 1) // 2 // 8) * 8))
    tb = min(batch_tile, B)
    if tb != B:
        # (8,128) rule: second-to-last block dim must be a multiple of 8
        # unless it equals the full array dim.
        tb = max(8, (tb // 8) * 8)
    grid = (pl.cdiv(B, tb),)

    return pl.pallas_call(
        _mlp_kernel,
        out_shape=jax.ShapeDtypeStruct((B, num_out), out_dtype),
        grid_spec=pl.GridSpec(
            grid=grid,
            in_specs=[
                # x: one batch tile per grid step (auto double-buffered DMA).
                pl.BlockSpec((tb, num_in), lambda i: (i, 0)),
                # Weights: same block every step -> stay VMEM-resident.
                pl.BlockSpec((num_in, num_hidden), lambda i: (0, 0)),
                pl.BlockSpec((num_hidden, num_out), lambda i: (0, 0)),
            ],
            out_specs=pl.BlockSpec((tb, num_out), lambda i: (i, 0)),
        ),
        compiler_params=pltpu.CompilerParams(
            # Batch tiles are independent -> megacore-shardable on v7x.
            dimension_semantics=("parallel",),
        ),
    )(x, w1t, w2t)


def reference_forward(x, w1, w2):
    lin1 = x @ w1.T
    lin2 = jnp.maximum(lin1, 0.0) @ w2.T
    return jax.nn.sigmoid(lin2)


if __name__ == "__main__":
    # Small shapes consistent with the module's forward. batch=16 with
    # batch_tile=8 exercises a multi-step (pipelined) grid.
    batch, num_in, num_hidden, num_out = 16, 32, 64, 16

    key = jax.random.PRNGKey(0)
    x = jax.random.normal(key, (batch, num_in), dtype=jnp.float32)

    # Deterministic parameters: the module __init__ sets both weights to ones.
    w1 = jnp.ones((num_hidden, num_in), dtype=jnp.float32)
    w2 = jnp.ones((num_out, num_hidden), dtype=jnp.float32)

    # f32 path with an explicit small tile (multi-step grid); exact sigmoid so
    # it should match the pure-JAX reference tightly.
    out = sigmoid_deeplift_forward(x, w1, w2, batch_tile=8)
    out = jax.block_until_ready(out)
    ref = reference_forward(x, w1, w2)
    assert out.shape == (batch, num_out), out.shape
    assert jnp.allclose(out, ref, atol=1e-5, rtol=1e-5), "f32 mismatch vs reference"

    # bf16-activation path (memory-bound throughput mode, default tile logic);
    # compare against the reference evaluated on the same bf16-rounded input.
    out_bf16 = jax.block_until_ready(
        sigmoid_deeplift_forward(x, w1, w2, compute_dtype=jnp.bfloat16)
    )
    ref_bf16 = reference_forward(x.astype(jnp.bfloat16).astype(jnp.float32), w1, w2)
    assert out_bf16.shape == (batch, num_out), out_bf16.shape
    assert jnp.allclose(out_bf16, ref_bf16, atol=1e-3, rtol=1e-3), (
        "bf16 mismatch vs bf16-rounded reference"
    )

    print("KERNEL_OK")
</pallas_src>

<mosaic_0001>
module attributes {stable_mosaic.version = 11 : i64} {
  func.func @_mlp_kernel(%arg0: i32, %arg1: memref<8x32xf32, #tpu.memory_space<vmem>>, %arg2: memref<32x64xf32, #tpu.memory_space<vmem>>, %arg3: memref<64x16xf32, #tpu.memory_space<vmem>>, %arg4: memref<8x16xf32, #tpu.memory_space<vmem>>) attributes {dimension_semantics = [#tpu.dimension_semantics<parallel>], iteration_bounds = array<i64: 2>, scalar_prefetch = 0 : i64, scratch_operands = 0 : i64, tpu.core_type = #tpu.core_type<tc>, window_params = [{transform_indices = @transform_0, window_bounds = array<i64: 8, 32>}, {pipeline_mode = #tpu.pipeline_mode<synchronous>, transform_indices = @transform_1, window_bounds = array<i64: 32, 64>}, {pipeline_mode = #tpu.pipeline_mode<synchronous>, transform_indices = @transform_2, window_bounds = array<i64: 64, 16>}, {transform_indices = @transform_3, window_bounds = array<i64: 8, 16>}]} {
    %c0 = arith.constant 0 : index
    %c0_0 = arith.constant 0 : index
    %0 = vector.load %arg1[%c0, %c0_0] : memref<8x32xf32, #tpu.memory_space<vmem>>, vector<8x32xf32>
    %c0_1 = arith.constant 0 : index
    %c0_2 = arith.constant 0 : index
    %1 = vector.load %arg2[%c0_1, %c0_2] : memref<32x64xf32, #tpu.memory_space<vmem>>, vector<32x64xf32>
    %cst = arith.constant dense<0.000000e+00> : vector<8x64xf32>
    %2 = tpu.matmul %0, %1, %cst {dimension_numbers = #tpu.dot_dimension_numbers<[1], [0], [0], [1], [0, 0, 1, 1], [], []>} : vector<8x32xf32>, vector<32x64xf32>, vector<8x64xf32> -> vector<8x64xf32>
    %cst_3 = arith.constant 0.000000e+00 : f32
    %3 = vector.broadcast %cst_3 : f32 to vector<8x64xf32>
    %4 = arith.maximumf %2, %3 : vector<8x64xf32>
    %c0_4 = arith.constant 0 : index
    %c0_5 = arith.constant 0 : index
    %5 = vector.load %arg3[%c0_4, %c0_5] : memref<64x16xf32, #tpu.memory_space<vmem>>, vector<64x16xf32>
    %cst_6 = arith.constant dense<0.000000e+00> : vector<8x16xf32>
    %6 = tpu.matmul %4, %5, %cst_6 {dimension_numbers = #tpu.dot_dimension_numbers<[1], [0], [0], [1], [0, 0, 1, 1], [], []>} : vector<8x64xf32>, vector<64x16xf32>, vector<8x16xf32> -> vector<8x16xf32>
    %7 = arith.negf %6 : vector<8x16xf32>
    %8 = math.exp %7 : vector<8x16xf32>
    %cst_7 = arith.constant 1.000000e+00 : f32
    %9 = vector.broadcast %cst_7 : f32 to vector<8x16xf32>
    %10 = arith.addf %9, %8 : vector<8x16xf32>
    %11 = arith.divf %9, %10 : vector<8x16xf32>
    %c0_8 = arith.constant 0 : index
    %c0_9 = arith.constant 0 : index
    %12 = vector.load %arg4[%c0_8, %c0_9] : memref<8x16xf32, #tpu.memory_space<vmem>>, vector<8x16xf32>
    tpu.vector_store %arg4[%c0_8, %c0_9], %11 {strides = array<i32>} : memref<8x16xf32, #tpu.memory_space<vmem>>, vector<8x16xf32>,
    return
  }
  func.func @transform_0(%arg0: i32) -> (i32, i32) {
    %c0_i32 = arith.constant 0 : i32
    %c0_i32_0 = arith.constant 0 : i32
    return %arg0, %c0_i32 : i32, i32
  }
  func.func @transform_1(%arg0: i32) -> (i32, i32) {
    %c0_i32 = arith.constant 0 : i32
    %c0_i32_0 = arith.constant 0 : i32
    %c0_i32_1 = arith.constant 0 : i32
    return %c0_i32, %c0_i32_0 : i32, i32
  }
  func.func @transform_2(%arg0: i32) -> (i32, i32) {
    %c0_i32 = arith.constant 0 : i32
    %c0_i32_0 = arith.constant 0 : i32
    %c0_i32_1 = arith.constant 0 : i32
    return %c0_i32, %c0_i32_0 : i32, i32
  }
  func.func @transform_3(%arg0: i32) -> (i32, i32) {
    %c0_i32 = arith.constant 0 : i32
    %c0_i32_0 = arith.constant 0 : i32
    return %arg0, %c0_i32 : i32, i32
  }
}

</mosaic_0001>

<llo_original>
// kernel: tpu_custom_call.1
$region0: #{tpu_custom_call.1}
  #allocation0 [shape = 'u32[]', space=smem, size = 0x4, offset = 0x4, fixed_abs, tag = 'smem constant byte address 0x4 - core index']
  #allocation1 [shape = 'u32[72,128]{1,0:T(1,128)}', space=vmem, size = 0x9000, scoped, tag = 'internal scratch']
  %s0 = inlined_call_operand.vmem [shape: f32[16,32], index: 0, kind: input, shape index: {}]
  %s1 = inlined_call_operand.vmem [shape: f32[32,64], index: 1, kind: input, shape index: {}]
  %s2 = inlined_call_operand.vmem [shape: f32[64,16], index: 2, kind: input, shape index: {}]
  %s3 = inlined_call_operand.hbm [shape: f32[16,16], index: 3, kind: output, shape index: {}]
  %s4 = sld [smem:[#allocation0]]
  $region45: #{tpu_custom_call.1} parent=0
    _
  %s6 = ssub.s32 1, %s4
  %s7 = scalar_select 0, %s6, %s4
  $region1: #{tpu_custom_call.1} parent=0
    #allocation2 [shape = 'u8[8192]{0}', space=vmem, size = 0x2000, scoped, tag = 'output window, operand 0']
    #allocation3 [shape = 's32[2]{0}', space=sflag, size = 0x8, scoped, tag = 'scoped memory for tpu_custom_call.1']
    %8 = vsyncpa [#allocation3], 0
    %s9 = scalar_lea.sflag [#allocation3], 1
    %10 = vsyncpa %s9, 0
    loop: start=0, step=1, limit=4
    $region2: #{tpu_custom_call.1} parent=1 // loop_pre_header
      _
    $region3: #{tpu_custom_call.1} parent=1 // loop_header
      %s12 = sphi 0, %s16
      %p13 = scmp.ge.s32.totalorder %s12, 4
      %s22 = sphi 0, %s24
      %s25 = sphi 0, %s22
      %s26 = sphi 0, %s25
      %s42 = sphi 0, %s26
      %s46 = sphi 0, %s46
      %s48 = sphi 0, %s46
      %s49 = sphi 0, %s48
      %s63 = sphi 0, %s49
      %s67 = sphi 0, %s67
      %s69 = sphi 0, %s67
      %s70 = sphi 0, %s69
      %s84 = sphi 0, %s70
      %s90 = sphi 0, %s92
      %s93 = sphi 0, %s90
      %s94 = sphi 0, %s93
      %s110 = sphi 0, %s94
    $region4: #{tpu_custom_call.1} parent=1 // loop_header_branch
      %15 = sbr.rel (%p13) target = $region8
    $region5: #{tpu_custom_call.1} parent=1 // loop_body
      %s17 = ssub.s32 %s12, 1
      %s18 = ssub.s32 %s12, 2
      %s19 = sadd.s32 %s12, 1
      %s20 = ssub.s32 %s12, %s19
      %p21 = scmp.eq.s32.totalorder %s20, 0
      %s23 = sadd.s32 %s22, 1
      %s24 = scalar_select %p21, %s22, %s23
      %p27 = pneg %p21
      %p28 = scmp.eq.s32.totalorder %s12, 1
      %p29 = por %p27, %p28
      %p30 = scmp.ne.s32.totalorder %s22, %s25
      %p31 = scmp.eq.s32.totalorder %s12, 0
      %p32 = por %p30, %p31
      %p33 = scmp.ne.s32.totalorder %s22, %s25
      %p34 = scmp.eq.s32.totalorder %s17, 1
      %p35 = por %p33, %p34
      %p36 = scmp.ne.s32.totalorder %s25, %s26
      %p37 = scmp.eq.s32.totalorder %s17, 0
      %p38 = por %p36, %p37
      %p39 = scmp.ne.s32.totalorder %s25, %s26
      %p40 = scmp.eq.s32.totalorder %s18, 1
      %p41 = por %p39, %p40
      %p43 = scmp.ne.s32.totalorder %s26, %s42
      %p44 = scmp.eq.s32.totalorder %s18, 0
      %p45 = por %p43, %p44
      %s47 = sadd.s32 %s46, 1
      %p50 = scmp.eq.s32.totalorder %s12, 1
      %p51 = scmp.ne.s32.totalorder %s46, %s48
      %p52 = scmp.eq.s32.totalorder %s12, 0
      %p53 = por %p51, %p52
      %p54 = scmp.ne.s32.totalorder %s46, %s48
      %p55 = scmp.eq.s32.totalorder %s17, 1
      %p56 = por %p54, %p55
      %p57 = scmp.ne.s32.totalorder %s48, %s49
      %p58 = scmp.eq.s32.totalorder %s17, 0
      %p59 = por %p57, %p58
      %p60 = scmp.ne.s32.totalorder %s48, %s49
      %p61 = scmp.eq.s32.totalorder %s18, 1
      %p62 = por %p60, %p61
      %p64 = scmp.ne.s32.totalorder %s49, %s63
      %p65 = scmp.eq.s32.totalorder %s18, 0
      %p66 = por %p64, %p65
      %s68 = sadd.s32 %s67, 1
      %p71 = scmp.eq.s32.totalorder %s12, 1
      %p72 = scmp.ne.s32.totalorder %s67, %s69
      %p73 = scmp.eq.s32.totalorder %s12, 0
      %p74 = por %p72, %p73
      %p75 = scmp.ne.s32.totalorder %s67, %s69
      %p76 = scmp.eq.s32.totalorder %s17, 1
      %p77 = por %p75, %p76
      %p78 = scmp.ne.s32.totalorder %s69, %s70
      %p79 = scmp.eq.s32.totalorder %s17, 0
      %p80 = por %p78, %p79
      %p81 = scmp.ne.s32.totalorder %s69, %s70
      %p82 = scmp.eq.s32.totalorder %s18, 1
      %p83 = por %p81, %p82
      %p85 = scmp.ne.s32.totalorder %s70, %s84
      %p86 = scmp.eq.s32.totalorder %s18, 0
      %p87 = por %p85, %p86
      %s88 = ssub.s32 %s12, %s19
      %p89 = scmp.eq.s32.totalorder %s88, 0
      %s91 = sadd.s32 %s90, 1
      %s92 = scalar_select %p89, %s90, %s91
      %p95 = pneg %p89
      %p96 = scmp.eq.s32.totalorder %s12, 1
      %p97 = por %p95, %p96
      %p98 = scmp.ne.s32.totalorder %s90, %s93
      %p99 = scmp.eq.s32.totalorder %s12, 0
      %p100 = por %p98, %p99
      %p101 = scmp.ne.s32.totalorder %s90, %s93
      %p102 = scmp.eq.s32.totalorder %s17, 1
      %p103 = por %p101, %p102
      %p104 = scmp.ne.s32.totalorder %s93, %s94
      %p105 = scmp.eq.s32.totalorder %s17, 0
      %p106 = por %p104, %p105
      %p107 = scmp.ne.s32.totalorder %s93, %s94
      %p108 = scmp.eq.s32.totalorder %s18, 1
      %p109 = por %p107, %p108
      %p111 = scmp.ne.s32.totalorder %s94, %s110
      %p112 = scmp.eq.s32.totalorder %s18, 0
      %p113 = por %p111, %p112
      %p114 = scmp.le.s32.totalorder 1, %s12
      %p115 = scmp.lt.s32.totalorder %s12, 3
      %p116 = pnand %p114, %p115
      %p117 = pneg %p116
      // Predicated region
      $region9: #{tpu_custom_call.1} parent=5 // pred_check
        _
      $region10: #{tpu_custom_call.1} parent=5 // pred_check_branch
        %119 = sbr.rel (%p116) target = $region12
      $region11: #{tpu_custom_call.1} parent=5 // pred_region
        %s120 = ssub.s32 %s12, 1
        // Predicated region
        $region13: #{tpu_custom_call.1} parent=11 // pred_check
          %p121 = pneg %p59
        $region14: #{tpu_custom_call.1} parent=11 // pred_check_branch
          %123 = sbr.rel (%p121) target = $region16
        $region15: #{tpu_custom_call.1} parent=11 // pred_region
          _
        $region16: #{tpu_custom_call.1} parent=11 // pred_fallthru
          _
        // Predicated region
        $region17: #{tpu_custom_call.1} parent=11 // pred_check
          %p124 = pneg %p80
        $region18: #{tpu_custom_call.1} parent=11 // pred_check_branch
          %126 = sbr.rel (%p124) target = $region20
        $region19: #{tpu_custom_call.1} parent=11 // pred_region
          _
        $region20: #{tpu_custom_call.1} parent=11 // pred_fallthru
          _
      $region12: #{tpu_custom_call.1} parent=5 // pred_fallthru
        _
      %p127 = scmp.lt.s32.totalorder %s12, 2
      // Predicated region
      $region21: #{tpu_custom_call.1} parent=5 // pred_check
        %p128 = pneg %p127
      $region22: #{tpu_custom_call.1} parent=5 // pred_check_branch
        %130 = sbr.rel (%p128) target = $region24
      $region23: #{tpu_custom_call.1} parent=5 // pred_region
        // Predicated region
        $region25: #{tpu_custom_call.1} parent=23 // pred_check
          %p131 = pneg %p32
        $region26: #{tpu_custom_call.1} parent=23 // pred_check_branch
          %133 = sbr.rel (%p131) target = $region28
        $region27: #{tpu_custom_call.1} parent=23 // pred_region
          %p134 = scmp.lt.s32.totalorder %s12, 1
          %s135 = scalar_select %p134, %s12, 1
          %s136 = smul.addr %s135, 8
          %s137 = scalar_lea.vmem %s0, %s136
        $region28: #{tpu_custom_call.1} parent=23 // pred_fallthru
          _
      $region24: #{tpu_custom_call.1} parent=5 // pred_fallthru
        _
      %p138 = scmp.le.s32.totalorder 1, %s12
      %p139 = scmp.lt.s32.totalorder %s12, 3
      %p140 = pnand %p138, %p139
      %p141 = pneg %p140
      // Predicated region
      $region29: #{tpu_custom_call.1} parent=5 // pred_check
        _
      $region30: #{tpu_custom_call.1} parent=5 // pred_check_branch
        %143 = sbr.rel (%p140) target = $region32
      $region31: #{tpu_custom_call.1} parent=5 // pred_region
        %s144 = ssub.s32 %s12, 1
        %p145 = scmp.lt.s32.totalorder %s17, 1
        %s146 = scalar_select %p145, %s17, 1
        %s147 = smul.addr %s146, 8
        %s148 = scalar_lea.vmem %s0, %s147
        %p149 = pneg %p38
        %p150 = pneg %p35
        %p151 = pneg %p59
        %p152 = pneg %p56
        %p153 = pneg %p80
        %p154 = pneg %p77
        %p155 = pneg %p106
        %p156 = pneg %p103
        %s157 = sand.u32 %s93, 1
        %s158 = scalar_lea.sflag [#allocation3], %s157
        %s159 = sand.u32 %s93, 1
        %s160 = smul.addr %s159, 8
        %s161 = scalar_lea.vmem [#allocation2], %s160
        %p162 = scmp.lt.s32.totalorder %s17, 1
        %s163 = scalar_select %p162, %s17, 1
        %s164 = smul.addr %s163, 8
        %s165 = scalar_lea.vmem %s0, %s164
        %v166 = vld [vmem:[%s165] sm:$0xff]
        %v167 = vld [vmem:[%s1] sm:$0xff]
        %v168 = vld [vmem:[%s1 + $0x8] sm:$0xff]
        %v169 = vld [vmem:[%s1 + $0x10] sm:$0xff]
        %v170 = vld [vmem:[%s1 + $0x18] sm:$0xff]
        %vm171 = vcmask 261120
        %v173 = vsel %vm171, %v166, 0
        %175 = vmatpush.msra.mxu0 0.0
        %176 = vmatpush.msra.mxu0 0.0
        %177 = vmatpush.msra.mxu0 0.0
        %178 = vmatpush.msra.mxu0 0.0
        %179 = vmatpush.msra.mxu0 0.0
        %180 = vmatpush.msra.mxu0 0.0
        %181 = vmatpush.msra.mxu0 0.0
        %182 = vmatpush.msra.mxu0 0.0
        %183 = vmatpush.msra.mxu0 0.0
        %184 = vmatpush.msra.mxu0 0.0
        %185 = vmatpush.msra.mxu0 0.0
        %186 = vmatpush.msra.mxu0 0.0
        %187 = vmatpush.msra.mxu0 %v170
        %188 = vmatpush.msra.mxu0 %v169
        %189 = vmatpush.msra.mxu0 %v168
        %190 = vmatpush.msra.mxu0 %v167
        %191 = vmatmul.f32.gmra.mxu0 %v173
        %v192 = vpop.f32.mrf.mxu0
        %v193 = vadd.f32 0.0, %v192
        %194 = vdwg.mxu0
        %v195 = vmax.f32 %v193, 0.0
        %v196 = vld [vmem:[%s2] sm:$0xff]
        %v197 = vld [vmem:[%s2 + $0x8] sm:$0xff]
        %v198 = vld [vmem:[%s2 + $0x10] sm:$0xff]
        %v199 = vld [vmem:[%s2 + $0x18] sm:$0xff]
        %v200 = vld [vmem:[%s2 + $0x20] sm:$0xff]
        %v201 = vld [vmem:[%s2 + $0x28] sm:$0xff]
        %v202 = vld [vmem:[%s2 + $0x30] sm:$0xff]
        %v203 = vld [vmem:[%s2 + $0x38] sm:$0xff]
        %vm204 = vcmask 523264
        %v206 = vsel %vm204, %v195, 0
        %208 = vmatpush.msra.mxu0 0.0
        %209 = vmatpush.msra.mxu0 0.0
        %210 = vmatpush.msra.mxu0 0.0
        %211 = vmatpush.msra.mxu0 0.0
        %212 = vmatpush.msra.mxu0 0.0
        %213 = vmatpush.msra.mxu0 0.0
        %214 = vmatpush.msra.mxu0 0.0
        %215 = vmatpush.msra.mxu0 0.0
        %216 = vmatpush.msra.mxu0 %v203
        %217 = vmatpush.msra.mxu0 %v202
        %218 = vmatpush.msra.mxu0 %v201
        %219 = vmatpush.msra.mxu0 %v200
        %220 = vmatpush.msra.mxu0 %v199
        %221 = vmatpush.msra.mxu0 %v198
        %222 = vmatpush.msra.mxu0 %v197
        %223 = vmatpush.msra.mxu0 %v196
        %224 = vmatmul.f32.gmra.mxu0 %v206
        %v225 = vpop.f32.mrf.mxu0
        %v226 = vadd.f32 0.0, %v225
        %227 = vdwg.mxu0
        %v228 = vxor.u32 %v226, 2147483648
        %v229 = vmul.f32 %v228, 1.442695
        %v230 = vpow.pop %v229
        %v231 = vadd.f32 %v230, 1.0
        %v232 = vrcp.pop %v231
        %v233 = vmul.f32 %v231, %v232
        %v234 = vsub.f32 1.0, %v233
        %v235 = vmul.f32 %v232, %v234
        %v236 = vadd.f32 %v232, %v235
        %vm237 = vweird.f32 %v231
        %vm238 = vweird.f32 %v232
        %vm239 = vmor %vm237, %vm238
        %v240 = vsel %vm239, %v232, %v236
        %v241 = vand.u32 2147483647, %v231
        %vm242 = vcmp.eq.f32.partialorder %v241, 8.507059e+37
        %v243 = vand.u32 %v231, 2147483648
        %v244 = vor.u32 1.1754944e-38, %v243
        %v245 = vsel %vm242, %v244, %v240
        %v246 = vmul.f32 1.0, %v245
        %vm247 = vcmask 130048
        %248 = vst.msk [vmem:[%s161] sm:$0xff] %vm247, %v246
        %s249 = sand.u32 %s93, 1
        %s250 = scalar_lea.sflag [#allocation3], %s249
        %s251 = sand.u32 %s93, 1
        %s252 = smul.addr %s251, 8
        %s253 = scalar_lea.vmem [#allocation2], %s252
        // Predicated region
        $region33: #{tpu_custom_call.1} parent=31 // pred_check
          %p254 = pneg %p103
        $region34: #{tpu_custom_call.1} parent=31 // pred_check_branch
          %256 = sbr.rel (%p254) target = $region36
        $region35: #{tpu_custom_call.1} parent=31 // pred_region
          %258 = vsyncadd %s250, 0
          %s259 = smul.addr %s17, 8
          %s260 = scalar_lea.hbm %s3, %s259
          %s262 = sshll.u32 %s253, 4
          %s263 = int_to_ptr.vmem [resolvable:$true] %s262
          %s264 = sshll.u32 %s260, 4
          %s265 = int_to_ptr.hbm [resolvable:$true] %s264
          %267 = dma.vmem_to_hbm [thread:$0]  %s263, 128, %s265, %s250
        $region36: #{tpu_custom_call.1} parent=31 // pred_fallthru
          _
      $region32: #{tpu_custom_call.1} parent=5 // pred_fallthru
        _
      %p268 = scmp.le.s32.totalorder 2, %s12
      // Predicated region
      $region37: #{tpu_custom_call.1} parent=5 // pred_check
        %p269 = pneg %p268
      $region38: #{tpu_custom_call.1} parent=5 // pred_check_branch
        %271 = sbr.rel (%p269) target = $region40
      $region39: #{tpu_custom_call.1} parent=5 // pred_region
        %s272 = ssub.s32 %s12, 2
        // Predicated region
        $region41: #{tpu_custom_call.1} parent=39 // pred_check
          %p273 = pneg %p109
        $region42: #{tpu_custom_call.1} parent=39 // pred_check_branch
          %275 = sbr.rel (%p273) target = $region44
        $region43: #{tpu_custom_call.1} parent=39 // pred_region
          %s276 = sand.u32 %s94, 1
          %s277 = scalar_lea.sflag [#allocation3], %s276
          %s278 = sand.u32 %s94, 1
          %s279 = smul.addr %s278, 8
          %s280 = scalar_lea.vmem [#allocation2], %s279
          %282 = dma.done %s277, 128
        $region44: #{tpu_custom_call.1} parent=39 // pred_fallthru
          _
      $region40: #{tpu_custom_call.1} parent=5 // pred_fallthru
        _
    $region6: #{tpu_custom_call.1} parent=1 // loop_footer
      %s16 = sadd.s32 1, %s12
    $region7: #{tpu_custom_call.1} parent=1 // loop_footer_branch
      %11 = sbr.rel target = $region3
    $region8: #{tpu_custom_call.1} parent=1 // loop_exit
      _
    %283 = vsyncpa [#allocation3], 1
    %s284 = scalar_lea.sflag [#allocation3], 1
    %285 = vsyncpa %s284, 1

</llo_original>
